<compile_context>
chip_gen: v7x
topology: tpu7x:2x2x1
jax: 0.10.0
libtpu: 0.0.40
codegen_flags: <defaults>
</compile_context>

<pallas_src>
import math

import jax
import jax.numpy as jnp
from jax.experimental import pallas as pl
from jax.experimental.pallas import tpu as pltpu


# ---------------------------------------------------------------------------
# Kernels
# ---------------------------------------------------------------------------
def _add_kernel(p_ref, q_ref, o_ref):
    """alpha == 0 fast path: forward(p, q) == p + q."""
    pv = p_ref[...].astype(jnp.float32)
    qv = q_ref[...].astype(jnp.float32)
    o_ref[...] = (pv + qv).astype(o_ref.dtype)


def _make_static_kernel(alpha: float):
    """Kernel specialized on a compile-time alpha: only the live soft_exp
    branch is emitted, and the scalar reciprocal is a Python constant."""
    a = float(alpha)

    def soft_exp(av, x):
        if av == 0.0:
            return x
        inv = 1.0 / av
        if av < 0.0:
            return -jnp.log(1.0 - av * (x + av)) * inv
        return (jnp.exp(av * x) - 1.0) * inv + av

    def kernel(p_ref, q_ref, o_ref):
        pv = p_ref[...].astype(jnp.float32)
        qv = q_ref[...].astype(jnp.float32)
        s = soft_exp(-a, pv) + soft_exp(-a, qv)
        o_ref[...] = soft_exp(a, s).astype(o_ref.dtype)

    return kernel


def _dynamic_kernel(alpha_ref, p_ref, q_ref, o_ref):
    """General kernel for a traced alpha (scalar prefetch in SMEM).
    Branchless 3-way select; scalar reciprocal hoisted (one scalar divide per
    block instead of 3 vector divides per element); double-where guards keep
    the unselected branch free of NaN/Inf."""
    a = alpha_ref[0]
    is_zero = a == 0.0
    a_safe = jnp.where(is_zero, jnp.float32(1.0), a)
    inv_a = jnp.float32(1.0) / a_safe            # scalar, once per block

    def soft_exp(av, inv_av, x):
        zero = av == 0.0
        neg = av < 0.0
        # Guard the argument of whichever branch is NOT selected.
        log_arg = jnp.where(neg, 1.0 - av * (x + av), jnp.float32(1.0))
        exp_arg = jnp.where(neg | zero, jnp.float32(0.0), av * x)
        nb = -jnp.log(log_arg) * inv_av
        pb = (jnp.exp(exp_arg) - 1.0) * inv_av + av
        return jnp.where(zero, x, jnp.where(neg, nb, pb))

    pv = p_ref[...].astype(jnp.float32)
    qv = q_ref[...].astype(jnp.float32)
    s = soft_exp(-a, -inv_a, pv) + soft_exp(-a, -inv_a, qv)
    o_ref[...] = soft_exp(a, inv_a, s).astype(o_ref.dtype)


# ---------------------------------------------------------------------------
# Wrapper
# ---------------------------------------------------------------------------
def _static_alpha_or_none(alpha):
    """Return alpha as a Python float if it is concrete, else None (traced)."""
    try:
        return float(alpha)
    except Exception:
        return None


def interpolate_add_multiply(p, q, alpha, *, rows_per_block=512, lanes=1024):
    """Pallas implementation of InterpolateAddMultiply.forward(p, q)."""
    assert p.shape == q.shape, "p and q must have the same shape"
    orig_shape = p.shape
    orig_dtype = p.dtype
    n = math.prod(orig_shape) if len(orig_shape) else 1

    static_alpha = _static_alpha_or_none(alpha)

    # Lane-dense 2-D layout.  Big blocks => low per-grid-step overhead and
    # unmasked, lane-dense stores.  Tiny inputs collapse to a single block.
    if n < lanes:
        lanes = 128
    rows = -(-n // lanes)                       # ceil
    tm = min(rows_per_block, rows)
    if tm >= 8:
        tm = (tm // 8) * 8                      # keep sublane dim a multiple of 8
    padded_rows = -(-rows // tm) * tm
    padded_n = padded_rows * lanes
    grid = padded_rows // tm

    pf = p.reshape(-1)
    qf = q.reshape(-1)
    if padded_n != n:
        pf = jnp.pad(pf, (0, padded_n - n))
        qf = jnp.pad(qf, (0, padded_n - n))
    p2 = pf.reshape(padded_rows, lanes)
    q2 = qf.reshape(padded_rows, lanes)

    # Advisory cost estimate for the XLA scheduler.
    item = jnp.dtype(orig_dtype).itemsize
    if static_alpha is not None and static_alpha == 0.0:
        flops, trans = padded_n, 0
    elif static_alpha is not None:
        flops, trans = 12 * padded_n, 3 * padded_n
    else:
        flops, trans = 24 * padded_n, 6 * padded_n
    cost = pl.CostEstimate(flops=int(flops), transcendentals=int(trans),
                           bytes_accessed=int(3 * padded_n * item))

    cparams = pltpu.CompilerParams(dimension_semantics=("parallel",))
    out_shape = jax.ShapeDtypeStruct((padded_rows, lanes), orig_dtype)

    if static_alpha is not None:
        kernel = (_add_kernel if static_alpha == 0.0
                  else _make_static_kernel(static_alpha))
        out2 = pl.pallas_call(
            kernel,
            out_shape=out_shape,
            grid_spec=pltpu.PrefetchScalarGridSpec(
                num_scalar_prefetch=0,
                grid=(grid,),
                in_specs=[pl.BlockSpec((tm, lanes), lambda i: (i, 0)),
                          pl.BlockSpec((tm, lanes), lambda i: (i, 0))],
                out_specs=pl.BlockSpec((tm, lanes), lambda i: (i, 0)),
            ),
            compiler_params=cparams,
            cost_estimate=cost,
        )(p2, q2)
    else:
        alpha_arr = jnp.asarray(alpha, jnp.float32).reshape((1,))
        out2 = pl.pallas_call(
            _dynamic_kernel,
            out_shape=out_shape,
            grid_spec=pltpu.PrefetchScalarGridSpec(
                num_scalar_prefetch=1,                # alpha -> SMEM
                grid=(grid,),
                in_specs=[pl.BlockSpec((tm, lanes), lambda i, a_ref: (i, 0)),
                          pl.BlockSpec((tm, lanes), lambda i, a_ref: (i, 0))],
                out_specs=pl.BlockSpec((tm, lanes), lambda i, a_ref: (i, 0)),
            ),
            compiler_params=cparams,
            cost_estimate=cost,
        )(alpha_arr, p2, q2)

    out_flat = out2.reshape(-1)
    if padded_n != n:
        out_flat = out_flat[:n]
    return out_flat.reshape(orig_shape)


# ---------------------------------------------------------------------------
# Pure-JAX reference (exact forward semantics of the PyTorch module)
# ---------------------------------------------------------------------------
def _soft_exp_ref(a, x):
    a_safe = jnp.where(a == 0.0, jnp.float32(1.0), a)
    neg = -jnp.log(1.0 - a * (x + a)) / a_safe
    pos = (jnp.exp(a * x) - 1.0) / a_safe + a
    return jnp.where(a == 0.0, x, jnp.where(a < 0.0, neg, pos))


def _forward_ref(alpha, p, q):
    a = jnp.asarray(alpha, jnp.float32)
    pf = p.astype(jnp.float32)
    qf = q.astype(jnp.float32)
    out = _soft_exp_ref(a, _soft_exp_ref(-a, pf) + _soft_exp_ref(-a, qf))
    return out.astype(p.dtype)


if __name__ == "__main__":
    key = jax.random.PRNGKey(0)
    k1, k2 = jax.random.split(key)
    shape = (2, 4, 16, 16)

    # 1) Module default init: alpha = 0.0 (concrete) -> plain-add fast path.
    p = jax.random.normal(k1, shape, dtype=jnp.float32)
    q = jax.random.normal(k2, shape, dtype=jnp.float32)
    out0 = jax.block_until_ready(interpolate_add_multiply(p, q, 0.0))
    assert out0.shape == shape and out0.dtype == p.dtype
    assert jnp.allclose(out0, _forward_ref(0.0, p, q), atol=1e-5, rtol=1e-5)

    # 2) Static nonzero alpha (both signs). Bounded inputs keep the log
    #    argument in-domain (same domain restriction as the PyTorch module).
    pu = jax.random.uniform(k1, shape, jnp.float32, minval=-1.0, maxval=1.0)
    qu = jax.random.uniform(k2, shape, jnp.float32, minval=-1.0, maxval=1.0)
    for a in (0.5, -0.5):
        outa = jax.block_until_ready(interpolate_add_multiply(pu, qu, a))
        assert jnp.allclose(outa, _forward_ref(a, pu, qu), atol=1e-5, rtol=1e-5)

    # 3) Traced alpha (learned nn.Parameter under jit) -> scalar-prefetch path.
    dyn = jax.jit(lambda a: interpolate_add_multiply(pu, qu, a))
    outd = jax.block_until_ready(dyn(jnp.float32(0.5)))
    assert jnp.allclose(outd, _forward_ref(0.5, pu, qu), atol=1e-5, rtol=1e-5)

    # 4) bf16 inputs stay bf16 through the DMA (no wrapper f32 materialization).
    pb, qb = pu.astype(jnp.bfloat16), qu.astype(jnp.bfloat16)
    outb = jax.block_until_ready(interpolate_add_multiply(pb, qb, 0.5))
    assert outb.dtype == jnp.bfloat16
    assert jnp.allclose(outb.astype(jnp.float32),
                        _forward_ref(0.5, pb, qb).astype(jnp.float32),
                        atol=2e-2, rtol=2e-2)

    print("KERNEL_OK")
</pallas_src>

<mosaic_0001>
module attributes {stable_mosaic.version = 11 : i64} {
  func.func @_add_kernel(%arg0: i32, %arg1: memref<2x1024xf32, #tpu.memory_space<vmem>>, %arg2: memref<2x1024xf32, #tpu.memory_space<vmem>>, %arg3: memref<2x1024xf32, #tpu.memory_space<vmem>>) attributes {dimension_semantics = [#tpu.dimension_semantics<parallel>], iteration_bounds = array<i64: 1>, scalar_prefetch = 0 : i64, scratch_operands = 0 : i64, tpu.core_type = #tpu.core_type<tc>, window_params = [{transform_indices = @transform_0, window_bounds = array<i64: 2, 1024>}, {transform_indices = @transform_1, window_bounds = array<i64: 2, 1024>}, {transform_indices = @transform_2, window_bounds = array<i64: 2, 1024>}]} {
    %c0 = arith.constant 0 : index
    %c0_0 = arith.constant 0 : index
    %0 = vector.load %arg1[%c0, %c0_0] : memref<2x1024xf32, #tpu.memory_space<vmem>>, vector<2x1024xf32>
    %c0_1 = arith.constant 0 : index
    %c0_2 = arith.constant 0 : index
    %1 = vector.load %arg2[%c0_1, %c0_2] : memref<2x1024xf32, #tpu.memory_space<vmem>>, vector<2x1024xf32>
    %2 = arith.addf %0, %1 : vector<2x1024xf32>
    %c0_3 = arith.constant 0 : index
    %c0_4 = arith.constant 0 : index
    %3 = vector.load %arg3[%c0_3, %c0_4] : memref<2x1024xf32, #tpu.memory_space<vmem>>, vector<2x1024xf32>
    tpu.vector_store %arg3[%c0_3, %c0_4], %2 {strides = array<i32>} : memref<2x1024xf32, #tpu.memory_space<vmem>>, vector<2x1024xf32>,
    return
  }
  func.func @transform_0(%arg0: i32) -> (i32, i32) {
    %c0_i32 = arith.constant 0 : i32
    %c0_i32_0 = arith.constant 0 : i32
    return %arg0, %c0_i32 : i32, i32
  }
  func.func @transform_1(%arg0: i32) -> (i32, i32) {
    %c0_i32 = arith.constant 0 : i32
    %c0_i32_0 = arith.constant 0 : i32
    return %arg0, %c0_i32 : i32, i32
  }
  func.func @transform_2(%arg0: i32) -> (i32, i32) {
    %c0_i32 = arith.constant 0 : i32
    %c0_i32_0 = arith.constant 0 : i32
    return %arg0, %c0_i32 : i32, i32
  }
}

</mosaic_0001>

<llo_original>
// kernel: tpu_custom_call.1
$region0: #{tpu_custom_call.1}
  #allocation0 [shape = 'u32[]', space=smem, size = 0x4, offset = 0x4, fixed_abs, tag = 'smem constant byte address 0x4 - core index']
  #allocation1 [shape = 'u32[144,128]{1,0:T(1,128)}', space=vmem, size = 0x12000, scoped, tag = 'internal scratch']
  %s0 = inlined_call_operand.hbm [shape: f32[2,1024], index: 0, kind: input, shape index: {}]
  %s1 = inlined_call_operand.hbm [shape: f32[2,1024], index: 1, kind: input, shape index: {}]
  %s2 = inlined_call_operand.hbm [shape: f32[2,1024], index: 2, kind: output, shape index: {}]
  %s3 = sld [smem:[#allocation0]]
  $region26: #{tpu_custom_call.1} parent=0
    _
  %s5 = ssub.s32 1, %s3
  %s6 = scalar_select 0, %s5, %s3
  $region1: #{tpu_custom_call.1} parent=0
    #allocation2 [shape = 'u8[8192]{0}', space=vmem, size = 0x2000, scoped, tag = 'input window, operand 0, single buffered']
    #allocation3 [shape = 's32[1]{0}', space=sflag, size = 0x4, scoped, tag = 'scoped memory for tpu_custom_call.1']
    #allocation4 [shape = 's32[1]{0}', space=sflag, size = 0x4, scoped, tag = 'scoped memory for tpu_custom_call.1']
    #allocation5 [shape = 'u8[8192]{0}', space=vmem, size = 0x2000, scoped, tag = 'input window, operand 1, single buffered']
    #allocation6 [shape = 's32[1]{0}', space=sflag, size = 0x4, scoped, tag = 'scoped memory for tpu_custom_call.1']
    #allocation7 [shape = 'u8[8192]{0}', space=vmem, size = 0x2000, scoped, tag = 'output window, operand 0, single buffered']
    %7 = vsyncpa [#allocation3], 0
    %8 = vsyncpa [#allocation6], 0
    %9 = vsyncpa [#allocation4], 0
    // Predicated region
    $region2: #{tpu_custom_call.1} parent=1 // pred_check
      _
    $region3: #{tpu_custom_call.1} parent=1 // pred_check_branch
      %11 = sbr.rel (0) target = $region5
    $region4: #{tpu_custom_call.1} parent=1 // pred_region
      %s13 = ssub.s32 256, 256
      %14 = vsyncadd [#allocation3], %s13
      %s16 = sshll.u32 [#allocation2], 4
      %s17 = int_to_ptr.vmem [resolvable:$true] %s16
      %19 = dma.hbm_to_vmem [thread:$0]  %s0, 256, %s17, [#allocation3]
    $region5: #{tpu_custom_call.1} parent=1 // pred_fallthru
      _
    // Predicated region
    $region6: #{tpu_custom_call.1} parent=1 // pred_check
      _
    $region7: #{tpu_custom_call.1} parent=1 // pred_check_branch
      %21 = sbr.rel (0) target = $region9
    $region8: #{tpu_custom_call.1} parent=1 // pred_region
      %s23 = ssub.s32 256, 256
      %24 = vsyncadd [#allocation6], %s23
      %s26 = sshll.u32 [#allocation5], 4
      %s27 = int_to_ptr.vmem [resolvable:$true] %s26
      %29 = dma.hbm_to_vmem [thread:$0]  %s1, 256, %s27, [#allocation6]
    $region9: #{tpu_custom_call.1} parent=1 // pred_fallthru
      _
    // Predicated region
    $region10: #{tpu_custom_call.1} parent=1 // pred_check
      _
    $region11: #{tpu_custom_call.1} parent=1 // pred_check_branch
      %31 = sbr.rel (0) target = $region13
    $region12: #{tpu_custom_call.1} parent=1 // pred_region
      %32 = dma.done [#allocation3], 256
    $region13: #{tpu_custom_call.1} parent=1 // pred_fallthru
      _
    // Predicated region
    $region14: #{tpu_custom_call.1} parent=1 // pred_check
      _
    $region15: #{tpu_custom_call.1} parent=1 // pred_check_branch
      %34 = sbr.rel (0) target = $region17
    $region16: #{tpu_custom_call.1} parent=1 // pred_region
      %35 = dma.done [#allocation6], 256
    $region17: #{tpu_custom_call.1} parent=1 // pred_fallthru
      _
    %v36 = vld [vmem:[#allocation2] sm:$0xff]
    %v37 = vld [vmem:[#allocation2 + $0x8] sm:$0xff]
    %v38 = vld [vmem:[#allocation5] sm:$0xff]
    %v39 = vld [vmem:[#allocation5 + $0x8] sm:$0xff]
    %v40 = vadd.f32 %v36, %v38
    %v41 = vadd.f32 %v37, %v39
    %42 = vst [vmem:[#allocation7] sm:$0xff] %v40
    %43 = vst [vmem:[#allocation7 + $0x8] sm:$0xff] %v41
    // Predicated region
    $region18: #{tpu_custom_call.1} parent=1 // pred_check
      _
    $region19: #{tpu_custom_call.1} parent=1 // pred_check_branch
      %45 = sbr.rel (0) target = $region21
    $region20: #{tpu_custom_call.1} parent=1 // pred_region
      %s47 = ssub.s32 256, 256
      %48 = vsyncadd [#allocation4], %s47
      %s50 = sshll.u32 [#allocation7], 4
      %s51 = int_to_ptr.vmem [resolvable:$true] %s50
      %53 = dma.vmem_to_hbm [thread:$0]  %s51, 256, %s2, [#allocation4]
    $region21: #{tpu_custom_call.1} parent=1 // pred_fallthru
      _
    // Predicated region
    $region22: #{tpu_custom_call.1} parent=1 // pred_check
      _
    $region23: #{tpu_custom_call.1} parent=1 // pred_check_branch
      %55 = sbr.rel (0) target = $region25
    $region24: #{tpu_custom_call.1} parent=1 // pred_region
      %56 = dma.done [#allocation4], 256
    $region25: #{tpu_custom_call.1} parent=1 // pred_fallthru
      _
    %57 = vsyncpa [#allocation3], 1
    %58 = vsyncpa [#allocation6], 1
    %59 = vsyncpa [#allocation4], 1

</llo_original>
